<compile_context>
chip_gen: v7x
topology: tpu7x:2x2x1
jax: 0.10.0
libtpu: 0.0.40
codegen_flags: <defaults>
</compile_context>

<pallas_src>
import functools

import jax
import jax.numpy as jnp
from jax import lax
from jax.experimental import pallas as pl
from jax.experimental.pallas import tpu as pltpu

_LANES = 128
_SUBLANES = 8
_NUM_SPLITS = 2        # leading "parallel" grid axis: 2 TCs on v7x, serial elsewhere
_MAX_TB = 4096         # batch lane-tile; 2-buffered f32 (N<=20) ~ 1.3 MiB << 16 MiB (v5e)


def _round_up(x: int, m: int) -> int:
    return ((x + m - 1) // m) * m


def _surv_loss_kernel(preds_ref, events_ref, durations_ref, intervals_ref, out_ref,
                      *, pos_weight, batch_size):
    i = pl.program_id(1)                               # batch-tile index ("arbitrary" axis)

    @pl.when(i == 0)
    def _():
        out_ref[...] = jnp.zeros_like(out_ref)         # per-split partial-sum block

    x = preds_ref[...].astype(jnp.float32)             # (N, TB) logits, batch on lanes
    events = events_ref[...]                           # (1, TB) f32 event indicator
    durations = durations_ref[...]                     # (1, TB) f32 time-to-event
    intervals = intervals_ref[...]                     # (N, 1)  f32 interval start ticks
    n, tb = x.shape

    # BCE weight: mask[j, b] = intervals[j] <= durations[b].  With monotone intervals
    # each column is a prefix of ones.
    mask = (intervals <= durations).astype(jnp.float32)            # (N, TB)

    # torch:  idx = mask.argmin(1) - 1 ; idx[idx == -1] = B   (B = GLOBAL batch size).
    # prefix count gives the same idx; count==N or count==0 -> sentinel B.
    # Padded columns have count==0 (durations padded below min(intervals)), so mask==0
    # and they contribute nothing.
    count = jnp.sum(mask, axis=0, keepdims=True)                   # (1, TB) f32
    sentinel = (count == jnp.float32(n)) | (count == 0.0)
    idx = jnp.where(sentinel, jnp.float32(batch_size), count - 1.0).astype(jnp.int32)

    # one_hot(idx, N) * events   (idx == B with B >= N -> zeros; torch would raise)
    row = lax.broadcasted_iota(jnp.int32, (n, tb), 0)
    survivals = (row == idx).astype(jnp.float32) * events          # (N, TB)

    # binary_cross_entropy_with_logits(preds, survivals, weight=mask, pos_weight=pw):
    #   loss = mask * [ pw*y*softplus(-x) + (1-y)*softplus(x) ]
    # shared-log1p softplus: 2 transcendentals / element (keeps EUP off the crit path).
    log1p_term = jnp.log1p(jnp.exp(-jnp.abs(x)))
    sp_pos = jnp.maximum(x, 0.0) + log1p_term                      # softplus(x)
    if pos_weight == 1.0:
        # pw==1:  y*softplus(-x) + (1-y)*softplus(x) == softplus(x) - y*x
        losses = mask * (sp_pos - survivals * x)
    else:
        sp_neg = sp_pos - x                                        # softplus(-x)
        losses = mask * (pos_weight * survivals * sp_neg + (1.0 - survivals) * sp_pos)

    # per-tile total, accumulated (broadcast) into the resident (8,128) partial block
    tile_total = jnp.sum(jnp.sum(losses, axis=0, keepdims=True), axis=1, keepdims=True)
    out_ref[...] += tile_total


def discrete_surv_loss(preds, events, durations, *, eps: float = 1e-6, masked: bool = True,
                       num_intervals: int = 20, interval_duration: float = 6.0,
                       ticks=None, reduction: str = "mean", event_weight=None):
    """JAX/Pallas equivalent of DiscreteSurvLoss.forward.

    `eps` / `masked` are unused, matching the reference forward pass.
    reduction('mean'|'sum') over the batch dim, then sum over intervals.
    """
    reduction = reduction.lower()
    assert reduction in ("mean", "sum")

    if ticks is not None:                                   # (fixed truthiness bug)
        interval_list = [float(t) for t in list(ticks)[:-1]]
    else:
        interval_list = [j * float(interval_duration) for j in range(num_intervals)]
    n_intervals = len(interval_list)
    pos_weight = 1.0 if event_weight is None else float(event_weight)   # (fixed 0.0 case)

    B, N = preds.shape
    assert N == n_intervals

    # ---- layout plumbing: batch on lanes, padded to NUM_SPLITS * tiles * TB columns ----
    tb = max(_LANES, min(_MAX_TB, _round_up(pl.cdiv(B, _NUM_SPLITS), _LANES)))
    tiles_per_split = pl.cdiv(B, _NUM_SPLITS * tb)
    padded_b = _NUM_SPLITS * tiles_per_split * tb
    pad = padded_b - B

    # padded columns get a duration below every interval -> mask == 0 -> zero loss
    pad_duration = min(interval_list) - 1.0

    preds_t = jnp.pad(jnp.transpose(preds), ((0, 0), (0, pad)))                 # (N, Bp)
    events_r = jnp.pad(jnp.reshape(events, (1, B)).astype(jnp.float32),
                       ((0, 0), (0, pad)))                                      # (1, Bp)
    durations_r = jnp.pad(jnp.reshape(durations, (1, B)).astype(jnp.float32),
                          ((0, 0), (0, pad)), constant_values=pad_duration)     # (1, Bp)
    intervals2d = jnp.asarray(interval_list, dtype=jnp.float32).reshape(N, 1)   # (N, 1)

    kernel = functools.partial(_surv_loss_kernel, pos_weight=pos_weight, batch_size=B)

    partials = pl.pallas_call(
        kernel,
        out_shape=jax.ShapeDtypeStruct((_NUM_SPLITS * _SUBLANES, _LANES), jnp.float32),
        grid=(_NUM_SPLITS, tiles_per_split),
        in_specs=[
            pl.BlockSpec((N, tb), lambda c, i: (0, c * tiles_per_split + i)),   # preds
            pl.BlockSpec((1, tb), lambda c, i: (0, c * tiles_per_split + i)),   # events
            pl.BlockSpec((1, tb), lambda c, i: (0, c * tiles_per_split + i)),   # durations
            pl.BlockSpec((N, 1), lambda c, i: (0, 0)),                          # intervals
        ],
        out_specs=pl.BlockSpec((_SUBLANES, _LANES), lambda c, i: (c, 0)),
        compiler_params=pltpu.CompilerParams(
            dimension_semantics=("parallel", "arbitrary")),
    )(preds_t, events_r, durations_r, intervals2d)

    # every element of a split's (8,128) block holds that split's partial sum
    total = jnp.sum(partials[0::_SUBLANES, 0])
    if reduction == "mean":
        total = total / jnp.float32(B)
    return total


def _ref_loss(preds, events, durations, intervals, reduction="mean", pos_weight=1.0):
    """Pure-JAX reference reproducing the torch forward (for correctness check)."""
    B, N = preds.shape
    durations = durations.reshape(-1, 1)
    mask = (intervals[None, :] <= durations).astype(jnp.float32)
    idx = jnp.argmin(mask, axis=1) - 1
    idx = jnp.where(idx == -1, B, idx)
    surv = jax.nn.one_hot(idx, N, dtype=jnp.float32) * events.reshape(-1, 1)
    sp = jax.nn.softplus
    losses = mask * (pos_weight * surv * sp(-preds) + (1.0 - surv) * sp(preds))
    red = jnp.mean(losses, axis=0) if reduction == "mean" else jnp.sum(losses, axis=0)
    return jnp.sum(red)


if __name__ == "__main__":
    key = jax.random.PRNGKey(0)
    k1, k2, k3 = jax.random.split(key, 3)

    B, N = 4, 8  # batch=4, num_intervals=8 (small, consistent with B x N preds)
    interval_duration = 6.0

    preds = jax.random.normal(k1, (B, N), dtype=jnp.float32)
    events = (jax.random.uniform(k2, (B, 1)) > 0.3).astype(jnp.float32)
    durations = jax.random.uniform(k3, (B, 1), minval=0.0, maxval=60.0, dtype=jnp.float32)

    intervals = jnp.arange(N, dtype=jnp.float32) * interval_duration

    # default path: mean reduction, pos_weight == 1
    out = discrete_surv_loss(preds, events, durations, num_intervals=N,
                             interval_duration=interval_duration, reduction="mean")
    out = jax.block_until_ready(out)
    ref = _ref_loss(preds, events, durations, intervals, reduction="mean", pos_weight=1.0)
    assert jnp.allclose(out, ref, rtol=1e-5, atol=1e-5), (float(out), float(ref))

    # general path: sum reduction, event_weight (pos_weight) != 1
    out2 = discrete_surv_loss(preds, events, durations, num_intervals=N,
                              interval_duration=interval_duration, reduction="sum",
                              event_weight=2.0)
    out2 = jax.block_until_ready(out2)
    ref2 = _ref_loss(preds, events, durations, intervals, reduction="sum", pos_weight=2.0)
    assert jnp.allclose(out2, ref2, rtol=1e-5, atol=1e-5), (float(out2), float(ref2))

    print("KERNEL_OK")
</pallas_src>

<mosaic_0001>
module attributes {stable_mosaic.version = 11 : i64} {
  func.func @_surv_loss_kernel(%arg0: i32, %arg1: i32, %arg2: memref<8x128xf32, #tpu.memory_space<vmem>>, %arg3: memref<1x128xf32, #tpu.memory_space<vmem>>, %arg4: memref<1x128xf32, #tpu.memory_space<vmem>>, %arg5: memref<8x1xf32, #tpu.memory_space<vmem>>, %arg6: memref<8x128xf32, #tpu.memory_space<vmem>>) attributes {dimension_semantics = [#tpu.dimension_semantics<parallel>, #tpu.dimension_semantics<arbitrary>], iteration_bounds = array<i64: 2, 1>, scalar_prefetch = 0 : i64, scratch_operands = 0 : i64, tpu.core_type = #tpu.core_type<tc>, window_params = [{transform_indices = @transform_0, window_bounds = array<i64: 8, 128>}, {transform_indices = @transform_1, window_bounds = array<i64: 1, 128>}, {transform_indices = @transform_2, window_bounds = array<i64: 1, 128>}, {pipeline_mode = #tpu.pipeline_mode<synchronous>, transform_indices = @transform_3, window_bounds = array<i64: 8, 1>}, {transform_indices = @transform_4, window_bounds = array<i64: 8, 128>}]} {
    %c0_i32 = arith.constant 0 : i32
    %0 = arith.cmpi eq, %arg1, %c0_i32 : i32
    %1 = arith.extui %0 : i1 to i32
    %c0_i32_0 = arith.constant 0 : i32
    %2 = arith.cmpi ne, %1, %c0_i32_0 : i32
    scf.if %2 {
      %cst_20 = arith.constant 0.000000e+00 : f32
      %50 = vector.broadcast %cst_20 : f32 to vector<8x128xf32>
      %c0_21 = arith.constant 0 : index
      %c0_22 = arith.constant 0 : index
      %51 = vector.load %arg6[%c0_21, %c0_22] : memref<8x128xf32, #tpu.memory_space<vmem>>, vector<8x128xf32>
      tpu.vector_store %arg6[%c0_21, %c0_22], %50 {strides = array<i32>} : memref<8x128xf32, #tpu.memory_space<vmem>>, vector<8x128xf32>,
    } else {
    }
    %c0 = arith.constant 0 : index
    %c0_1 = arith.constant 0 : index
    %3 = vector.load %arg2[%c0, %c0_1] : memref<8x128xf32, #tpu.memory_space<vmem>>, vector<8x128xf32>
    %c0_2 = arith.constant 0 : index
    %c0_3 = arith.constant 0 : index
    %4 = vector.load %arg3[%c0_2, %c0_3] : memref<1x128xf32, #tpu.memory_space<vmem>>, vector<1x128xf32>
    %c0_4 = arith.constant 0 : index
    %c0_5 = arith.constant 0 : index
    %5 = vector.load %arg4[%c0_4, %c0_5] : memref<1x128xf32, #tpu.memory_space<vmem>>, vector<1x128xf32>
    %c0_6 = arith.constant 0 : index
    %c0_7 = arith.constant 0 : index
    %6 = vector.load %arg5[%c0_6, %c0_7] : memref<8x1xf32, #tpu.memory_space<vmem>>, vector<8x1xf32>
    %7 = vector.broadcast %6 : vector<8x1xf32> to vector<8x128xf32>
    %8 = vector.broadcast %5 : vector<1x128xf32> to vector<8x128xf32>
    %9 = arith.cmpf ole, %7, %8 : vector<8x128xf32>
    %10 = arith.extui %9 : vector<8x128xi1> to vector<8x128xi32>
    %11 = arith.sitofp %10 : vector<8x128xi32> to vector<8x128xf32>
    %cst = arith.constant dense<0.000000e+00> : vector<128xf32>
    %12 = vector.multi_reduction <add>, %11, %cst [0] : vector<8x128xf32> to vector<128xf32>
    %13 = vector.shape_cast %12 : vector<128xf32> to vector<1x128xf32>
    %cst_8 = arith.constant 8.000000e+00 : f32
    %14 = vector.broadcast %cst_8 : f32 to vector<1x128xf32>
    %15 = arith.cmpf oeq, %13, %14 : vector<1x128xf32>
    %cst_9 = arith.constant 0.000000e+00 : f32
    %16 = vector.broadcast %cst_9 : f32 to vector<1x128xf32>
    %17 = arith.cmpf oeq, %13, %16 : vector<1x128xf32>
    %18 = arith.ori %15, %17 : vector<1x128xi1>
    %cst_10 = arith.constant 1.000000e+00 : f32
    %19 = vector.broadcast %cst_10 : f32 to vector<1x128xf32>
    %20 = arith.subf %13, %19 : vector<1x128xf32>
    %cst_11 = arith.constant 4.000000e+00 : f32
    %21 = vector.broadcast %cst_11 : f32 to vector<1x128xf32>
    %22 = arith.select %18, %21, %20 : vector<1x128xi1>, vector<1x128xf32>
    %23 = arith.fptosi %22 : vector<1x128xf32> to vector<1x128xi32>
    %24 = tpu.iota {dimensions = array<i32: 0>} : vector<8x128xi32>
    %25 = vector.broadcast %23 : vector<1x128xi32> to vector<8x128xi32>
    %26 = arith.cmpi eq, %24, %25 : vector<8x128xi32>
    %27 = arith.extui %26 : vector<8x128xi1> to vector<8x128xi32>
    %28 = arith.sitofp %27 : vector<8x128xi32> to vector<8x128xf32>
    %29 = vector.broadcast %4 : vector<1x128xf32> to vector<8x128xf32>
    %30 = arith.mulf %28, %29 : vector<8x128xf32>
    %31 = math.absf %3 : vector<8x128xf32>
    %cst_12 = arith.constant 0.000000e+00 : f32
    %32 = vector.broadcast %cst_12 : f32 to vector<8x128xf32>
    %33 = arith.subf %32, %31 : vector<8x128xf32>
    %34 = math.exp %33 : vector<8x128xf32>
    %35 = math.log1p %34 : vector<8x128xf32>
    %cst_13 = arith.constant 0.000000e+00 : f32
    %36 = vector.broadcast %cst_13 : f32 to vector<8x128xf32>
    %37 = arith.maximumf %3, %36 : vector<8x128xf32>
    %38 = arith.addf %37, %35 : vector<8x128xf32>
    %39 = arith.mulf %30, %3 : vector<8x128xf32>
    %40 = arith.subf %38, %39 : vector<8x128xf32>
    %41 = arith.mulf %11, %40 : vector<8x128xf32>
    %cst_14 = arith.constant dense<0.000000e+00> : vector<128xf32>
    %42 = vector.multi_reduction <add>, %41, %cst_14 [0] : vector<8x128xf32> to vector<128xf32>
    %43 = vector.shape_cast %42 : vector<128xf32> to vector<1x128xf32>
    %cst_15 = arith.constant dense<0.000000e+00> : vector<1xf32>
    %44 = vector.multi_reduction <add>, %43, %cst_15 [1] : vector<1x128xf32> to vector<1xf32>
    %45 = vector.shape_cast %44 : vector<1xf32> to vector<1x1xf32>
    %c0_16 = arith.constant 0 : index
    %c0_17 = arith.constant 0 : index
    %46 = vector.load %arg6[%c0_16, %c0_17] : memref<8x128xf32, #tpu.memory_space<vmem>>, vector<8x128xf32>
    %47 = vector.broadcast %45 : vector<1x1xf32> to vector<8x128xf32>
    %48 = arith.addf %46, %47 : vector<8x128xf32>
    %c0_18 = arith.constant 0 : index
    %c0_19 = arith.constant 0 : index
    %49 = vector.load %arg6[%c0_18, %c0_19] : memref<8x128xf32, #tpu.memory_space<vmem>>, vector<8x128xf32>
    tpu.vector_store %arg6[%c0_18, %c0_19], %48 {strides = array<i32>} : memref<8x128xf32, #tpu.memory_space<vmem>>, vector<8x128xf32>,
    return
  }
  func.func @transform_0(%arg0: i32, %arg1: i32) -> (i32, i32) {
    %c1_i32 = arith.constant 1 : i32
    %0 = arith.muli %arg0, %c1_i32 : i32
    %1 = arith.addi %0, %arg1 : i32
    %c0_i32 = arith.constant 0 : i32
    %c0_i32_0 = arith.constant 0 : i32
    return %c0_i32, %1 : i32, i32
  }
  func.func @transform_1(%arg0: i32, %arg1: i32) -> (i32, i32) {
    %c1_i32 = arith.constant 1 : i32
    %0 = arith.muli %arg0, %c1_i32 : i32
    %1 = arith.addi %0, %arg1 : i32
    %c0_i32 = arith.constant 0 : i32
    %c0_i32_0 = arith.constant 0 : i32
    return %c0_i32, %1 : i32, i32
  }
  func.func @transform_2(%arg0: i32, %arg1: i32) -> (i32, i32) {
    %c1_i32 = arith.constant 1 : i32
    %0 = arith.muli %arg0, %c1_i32 : i32
    %1 = arith.addi %0, %arg1 : i32
    %c0_i32 = arith.constant 0 : i32
    %c0_i32_0 = arith.constant 0 : i32
    return %c0_i32, %1 : i32, i32
  }
  func.func @transform_3(%arg0: i32, %arg1: i32) -> (i32, i32) {
    %c0_i32 = arith.constant 0 : i32
    %c0_i32_0 = arith.constant 0 : i32
    %c0_i32_1 = arith.constant 0 : i32
    return %c0_i32, %c0_i32_0 : i32, i32
  }
  func.func @transform_4(%arg0: i32, %arg1: i32) -> (i32, i32) {
    %c0_i32 = arith.constant 0 : i32
    %c0_i32_0 = arith.constant 0 : i32
    return %arg0, %c0_i32 : i32, i32
  }
}

</mosaic_0001>

<llo_original>
// kernel: tpu_custom_call.1
$region0: #{tpu_custom_call.1}
  #allocation0 [shape = 'u32[]', space=smem, size = 0x4, offset = 0x4, fixed_abs, tag = 'smem constant byte address 0x4 - core index']
  #allocation1 [shape = 'u32[144,128]{1,0:T(1,128)}', space=vmem, size = 0x12000, scoped, tag = 'internal scratch']
  %s0 = inlined_call_operand.hbm [shape: f32[8,256], index: 0, kind: input, shape index: {}]
  %s1 = inlined_call_operand.vmem [shape: f32[1,256], index: 1, kind: input, shape index: {}]
  %s2 = inlined_call_operand.vmem [shape: f32[1,256], index: 2, kind: input, shape index: {}]
  %s3 = inlined_call_operand.vmem [shape: f32[8,1], index: 3, kind: input, shape index: {}]
  %s4 = inlined_call_operand.hbm [shape: f32[16,128], index: 4, kind: output, shape index: {}]
  %s5 = sld [smem:[#allocation0]]
  $region57: #{tpu_custom_call.1} parent=0
    _
  %s7 = ssub.s32 1, %s5
  %s8 = scalar_select 0, %s7, %s5
  $region1: #{tpu_custom_call.1} parent=0
    #allocation2 [shape = 'u8[8192]{0}', space=vmem, size = 0x2000, scoped, tag = 'input window, operand 0']
    #allocation3 [shape = 's32[2]{0}', space=sflag, size = 0x8, scoped, tag = 'scoped memory for tpu_custom_call.1']
    #allocation4 [shape = 's32[2]{0}', space=sflag, size = 0x8, scoped, tag = 'scoped memory for tpu_custom_call.1']
    #allocation5 [shape = 'u8[8192]{0}', space=vmem, size = 0x2000, scoped, tag = 'output window, operand 0']
    %9 = vsyncpa [#allocation3], 0
    %s10 = scalar_lea.sflag [#allocation3], 1
    %11 = vsyncpa %s10, 0
    %12 = vsyncpa [#allocation4], 0
    %s13 = scalar_lea.sflag [#allocation4], 1
    %14 = vsyncpa %s13, 0
    loop: start=0, step=1, limit=4
    $region2: #{tpu_custom_call.1} parent=1 // loop_pre_header
      _
    $region3: #{tpu_custom_call.1} parent=1 // loop_header
      %s16 = sphi 0, %s20
      %p17 = scmp.ge.s32.totalorder %s16, 4
      %s23 = sphi 0, %s35
      %s24 = sphi 0, %s31
      %s25 = sphi 0, %s23
      %s26 = sphi 0, %s24
      %s27 = sphi 0, %s25
      %s28 = sphi 0, %s26
      %s40 = sphi 0, %s42
      %s43 = sphi 0, %s40
      %s44 = sphi 0, %s43
      %s60 = sphi 0, %s44
      %s68 = sphi 0, %s70
      %s71 = sphi 0, %s68
      %s72 = sphi 0, %s71
      %s88 = sphi 0, %s72
      %s96 = sphi 0, %s98
      %s99 = sphi 0, %s96
      %s100 = sphi 0, %s99
      %s116 = sphi 0, %s100
      %s120 = sphi 0, %s120
      %s122 = sphi 0, %s120
      %s123 = sphi 0, %s122
      %s137 = sphi 0, %s123
      %s143 = sphi 0, %s145
      %s146 = sphi 0, %s143
      %s147 = sphi 0, %s146
      %s163 = sphi 0, %s147
    $region4: #{tpu_custom_call.1} parent=1 // loop_header_branch
      %19 = sbr.rel (%p17) target = $region8
    $region5: #{tpu_custom_call.1} parent=1 // loop_body
      %s21 = ssub.s32 %s16, 1
      %s22 = ssub.s32 %s16, 2
      %s29 = sadd.s32 1, %s24
      %p30 = scmp.ge.s32.totalorder %s29, 1
      %s31 = scalar_select %p30, 0, %s29
      %s32 = sadd.s32 1, %s23
      %s33 = scalar_select %p30, %s32, %s23
      %p34 = scmp.ge.s32.totalorder %s33, 2
      %s35 = scalar_select %p34, 0, %s33
      %s36 = sadd.s32 %s23, %s24
      %s37 = sadd.s32 %s35, %s31
      %s38 = ssub.s32 %s36, %s37
      %p39 = scmp.eq.s32.totalorder %s38, 0
      %s41 = sadd.s32 %s40, 1
      %s42 = scalar_select %p39, %s40, %s41
      %p45 = pneg %p39
      %p46 = scmp.eq.s32.totalorder %s16, 1
      %p47 = por %p45, %p46
      %p48 = scmp.ne.s32.totalorder %s40, %s43
      %p49 = scmp.eq.s32.totalorder %s16, 0
      %p50 = por %p48, %p49
      %p51 = scmp.ne.s32.totalorder %s40, %s43
      %p52 = scmp.eq.s32.totalorder %s21, 1
      %p53 = por %p51, %p52
      %p54 = scmp.ne.s32.totalorder %s43, %s44
      %p55 = scmp.eq.s32.totalorder %s21, 0
      %p56 = por %p54, %p55
      %p57 = scmp.ne.s32.totalorder %s43, %s44
      %p58 = scmp.eq.s32.totalorder %s22, 1
      %p59 = por %p57, %p58
      %p61 = scmp.ne.s32.totalorder %s44, %s60
      %p62 = scmp.eq.s32.totalorder %s22, 0
      %p63 = por %p61, %p62
      %s64 = sadd.s32 %s23, %s24
      %s65 = sadd.s32 %s35, %s31
      %s66 = ssub.s32 %s64, %s65
      %p67 = scmp.eq.s32.totalorder %s66, 0
      %s69 = sadd.s32 %s68, 1
      %s70 = scalar_select %p67, %s68, %s69
      %p73 = pneg %p67
      %p74 = scmp.eq.s32.totalorder %s16, 1
      %p75 = por %p73, %p74
      %p76 = scmp.ne.s32.totalorder %s68, %s71
      %p77 = scmp.eq.s32.totalorder %s16, 0
      %p78 = por %p76, %p77
      %p79 = scmp.ne.s32.totalorder %s68, %s71
      %p80 = scmp.eq.s32.totalorder %s21, 1
      %p81 = por %p79, %p80
      %p82 = scmp.ne.s32.totalorder %s71, %s72
      %p83 = scmp.eq.s32.totalorder %s21, 0
      %p84 = por %p82, %p83
      %p85 = scmp.ne.s32.totalorder %s71, %s72
      %p86 = scmp.eq.s32.totalorder %s22, 1
      %p87 = por %p85, %p86
      %p89 = scmp.ne.s32.totalorder %s72, %s88
      %p90 = scmp.eq.s32.totalorder %s22, 0
      %p91 = por %p89, %p90
      %s92 = sadd.s32 %s23, %s24
      %s93 = sadd.s32 %s35, %s31
      %s94 = ssub.s32 %s92, %s93
      %p95 = scmp.eq.s32.totalorder %s94, 0
      %s97 = sadd.s32 %s96, 1
      %s98 = scalar_select %p95, %s96, %s97
      %p101 = pneg %p95
      %p102 = scmp.eq.s32.totalorder %s16, 1
      %p103 = por %p101, %p102
      %p104 = scmp.ne.s32.totalorder %s96, %s99
      %p105 = scmp.eq.s32.totalorder %s16, 0
      %p106 = por %p104, %p105
      %p107 = scmp.ne.s32.totalorder %s96, %s99
      %p108 = scmp.eq.s32.totalorder %s21, 1
      %p109 = por %p107, %p108
      %p110 = scmp.ne.s32.totalorder %s99, %s100
      %p111 = scmp.eq.s32.totalorder %s21, 0
      %p112 = por %p110, %p111
      %p113 = scmp.ne.s32.totalorder %s99, %s100
      %p114 = scmp.eq.s32.totalorder %s22, 1
      %p115 = por %p113, %p114
      %p117 = scmp.ne.s32.totalorder %s100, %s116
      %p118 = scmp.eq.s32.totalorder %s22, 0
      %p119 = por %p117, %p118
      %s121 = sadd.s32 %s120, 1
      %p124 = scmp.eq.s32.totalorder %s16, 1
      %p125 = scmp.ne.s32.totalorder %s120, %s122
      %p126 = scmp.eq.s32.totalorder %s16, 0
      %p127 = por %p125, %p126
      %p128 = scmp.ne.s32.totalorder %s120, %s122
      %p129 = scmp.eq.s32.totalorder %s21, 1
      %p130 = por %p128, %p129
      %p131 = scmp.ne.s32.totalorder %s122, %s123
      %p132 = scmp.eq.s32.totalorder %s21, 0
      %p133 = por %p131, %p132
      %p134 = scmp.ne.s32.totalorder %s122, %s123
      %p135 = scmp.eq.s32.totalorder %s22, 1
      %p136 = por %p134, %p135
      %p138 = scmp.ne.s32.totalorder %s123, %s137
      %p139 = scmp.eq.s32.totalorder %s22, 0
      %p140 = por %p138, %p139
      %s141 = ssub.s32 %s23, %s35
      %p142 = scmp.eq.s32.totalorder %s141, 0
      %s144 = sadd.s32 %s143, 1
      %s145 = scalar_select %p142, %s143, %s144
      %p148 = pneg %p142
      %p149 = scmp.eq.s32.totalorder %s16, 1
      %p150 = por %p148, %p149
      %p151 = scmp.ne.s32.totalorder %s143, %s146
      %p152 = scmp.eq.s32.totalorder %s16, 0
      %p153 = por %p151, %p152
      %p154 = scmp.ne.s32.totalorder %s143, %s146
      %p155 = scmp.eq.s32.totalorder %s21, 1
      %p156 = por %p154, %p155
      %p157 = scmp.ne.s32.totalorder %s146, %s147
      %p158 = scmp.eq.s32.totalorder %s21, 0
      %p159 = por %p157, %p158
      %p160 = scmp.ne.s32.totalorder %s146, %s147
      %p161 = scmp.eq.s32.totalorder %s22, 1
      %p162 = por %p160, %p161
      %p164 = scmp.ne.s32.totalorder %s147, %s163
      %p165 = scmp.eq.s32.totalorder %s22, 0
      %p166 = por %p164, %p165
      %p167 = scmp.le.s32.totalorder 1, %s16
      %p168 = scmp.lt.s32.totalorder %s16, 3
      %p169 = pnand %p167, %p168
      %p170 = pneg %p169
      // Predicated region
      $region9: #{tpu_custom_call.1} parent=5 // pred_check
        _
      $region10: #{tpu_custom_call.1} parent=5 // pred_check_branch
        %172 = sbr.rel (%p169) target = $region12
      $region11: #{tpu_custom_call.1} parent=5 // pred_region
        %s173 = ssub.s32 %s16, 1
        // Predicated region
        $region13: #{tpu_custom_call.1} parent=11 // pred_check
          %p174 = pneg %p133
        $region14: #{tpu_custom_call.1} parent=11 // pred_check_branch
          %176 = sbr.rel (%p174) target = $region16
        $region15: #{tpu_custom_call.1} parent=11 // pred_region
          _
        $region16: #{tpu_custom_call.1} parent=11 // pred_fallthru
          _
      $region12: #{tpu_custom_call.1} parent=5 // pred_fallthru
        _
      %p177 = scmp.lt.s32.totalorder %s16, 2
      // Predicated region
      $region17: #{tpu_custom_call.1} parent=5 // pred_check
        %p178 = pneg %p177
      $region18: #{tpu_custom_call.1} parent=5 // pred_check_branch
        %180 = sbr.rel (%p178) target = $region20
      $region19: #{tpu_custom_call.1} parent=5 // pred_region
        // Predicated region
        $region21: #{tpu_custom_call.1} parent=19 // pred_check
          %p181 = pneg %p50
        $region22: #{tpu_custom_call.1} parent=19 // pred_check_branch
          %183 = sbr.rel (%p181) target = $region24
        $region23: #{tpu_custom_call.1} parent=19 // pred_region
          %s184 = sand.u32 %s40, 1
          %s185 = scalar_lea.sflag [#allocation3], %s184
          %s186 = sand.u32 %s40, 1
          %s187 = smul.addr %s186, 8
          %s188 = scalar_lea.vmem [#allocation2], %s187
          %s189 = sadd.s32 %s23, %s24
          %s191 = ssub.s32 128, 128
          %192 = vsyncadd %s185, %s191
          %s193 = smul.addr %s189, 128
          %s194 = scalar_lea.hbm %s0, %s193
          %s196 = sshll.u32 %s188, 4
          %s197 = int_to_ptr.vmem [resolvable:$true] %s196
          %199 = dma.hbm_to_vmem [thread:$0]  %s194, 128, %s197, %s185
        $region24: #{tpu_custom_call.1} parent=19 // pred_fallthru
          _
        // Predicated region
        $region25: #{tpu_custom_call.1} parent=19 // pred_check
          %p200 = pneg %p78
        $region26: #{tpu_custom_call.1} parent=19 // pred_check_branch
          %202 = sbr.rel (%p200) target = $region28
        $region27: #{tpu_custom_call.1} parent=19 // pred_region
          %s203 = sadd.s32 %s23, %s24
          %p204 = scmp.lt.s32.totalorder %s203, 1
          %s205 = scalar_select %p204, %s203, 1
          %s206 = scalar_lea.vmem %s1, %s205
          %s207 = sadd.s32 %s23, %s24
        $region28: #{tpu_custom_call.1} parent=19 // pred_fallthru
          _
        // Predicated region
        $region29: #{tpu_custom_call.1} parent=19 // pred_check
          %p208 = pneg %p106
        $region30: #{tpu_custom_call.1} parent=19 // pred_check_branch
          %210 = sbr.rel (%p208) target = $region32
        $region31: #{tpu_custom_call.1} parent=19 // pred_region
          %s211 = sadd.s32 %s23, %s24
          %p212 = scmp.lt.s32.totalorder %s211, 1
          %s213 = scalar_select %p212, %s211, 1
          %s214 = scalar_lea.vmem %s2, %s213
          %s215 = sadd.s32 %s23, %s24
        $region32: #{tpu_custom_call.1} parent=19 // pred_fallthru
          _
      $region20: #{tpu_custom_call.1} parent=5 // pred_fallthru
        _
      %p216 = scmp.le.s32.totalorder 1, %s16
      %p217 = scmp.lt.s32.totalorder %s16, 3
      %p218 = pnand %p216, %p217
      %p219 = pneg %p218
      // Predicated region
      $region33: #{tpu_custom_call.1} parent=5 // pred_check
        _
      $region34: #{tpu_custom_call.1} parent=5 // pred_check_branch
        %221 = sbr.rel (%p218) target = $region36
      $region35: #{tpu_custom_call.1} parent=5 // pred_region
        %s222 = ssub.s32 %s16, 1
        %s223 = sand.u32 %s43, 1
        %s224 = scalar_lea.sflag [#allocation3], %s223
        %s225 = sand.u32 %s43, 1
        %s226 = smul.addr %s225, 8
        %s227 = scalar_lea.vmem [#allocation2], %s226
        // Predicated region
        $region37: #{tpu_custom_call.1} parent=35 // pred_check
          %p228 = pneg %p56
        $region38: #{tpu_custom_call.1} parent=35 // pred_check_branch
          %230 = sbr.rel (%p228) target = $region40
        $region39: #{tpu_custom_call.1} parent=35 // pred_region
          %231 = dma.done %s224, 128
        $region40: #{tpu_custom_call.1} parent=35 // pred_fallthru
          _
        %s232 = sand.u32 %s43, 1
        %s233 = scalar_lea.sflag [#allocation3], %s232
        %s234 = sand.u32 %s43, 1
        %s235 = smul.addr %s234, 8
        %s236 = scalar_lea.vmem [#allocation2], %s235
        %p237 = pneg %p56
        %p238 = pneg %p53
        %s239 = sadd.s32 %s25, %s26
        %p240 = scmp.lt.s32.totalorder %s239, 1
        %s241 = scalar_select %p240, %s239, 1
        %s242 = scalar_lea.vmem %s1, %s241
        %p243 = pneg %p84
        %p244 = pneg %p81
        %s245 = sadd.s32 %s25, %s26
        %p246 = scmp.lt.s32.totalorder %s245, 1
        %s247 = scalar_select %p246, %s245, 1
        %s248 = scalar_lea.vmem %s2, %s247
        %p249 = pneg %p112
        %p250 = pneg %p109
        %p251 = pneg %p133
        %p252 = pneg %p130
        %p253 = pneg %p159
        %p254 = pneg %p156
        %s255 = sand.u32 %s146, 1
        %s256 = scalar_lea.sflag [#allocation4], %s255
        %s257 = sand.u32 %s146, 1
        %s258 = smul.addr %s257, 8
        %s259 = scalar_lea.vmem [#allocation5], %s258
        %s260 = sadd.s32 %s25, %s26
        %s261 = sadd.s32 %s25, %s26
        %p262 = scmp.lt.s32.totalorder %s261, 1
        %s263 = scalar_select %p262, %s261, 1
        %s264 = scalar_lea.vmem %s1, %s263
        %s265 = sadd.s32 %s25, %s26
        %s266 = sadd.s32 %s25, %s26
        %p267 = scmp.lt.s32.totalorder %s266, 1
        %s268 = scalar_select %p267, %s266, 1
        %s269 = scalar_lea.vmem %s2, %s268
        %s270 = sadd.s32 %s25, %s26
        %p271 = scmp.eq.s32.totalorder %s26, 0
        // Predicated region
        $region41: #{tpu_custom_call.1} parent=35 // pred_check
          %p272 = pneg %p271
        $region42: #{tpu_custom_call.1} parent=35 // pred_check_branch
          %274 = sbr.rel (%p272) target = $region44
        $region43: #{tpu_custom_call.1} parent=35 // pred_region
          %275 = vst [vmem:[%s259] sm:$0xff] 0.0
        $region44: #{tpu_custom_call.1} parent=35 // pred_fallthru
          _
        %v276 = vld [vmem:[%s227] sm:$0xff]
        %v277 = vld [vmem:[%s264] sm:$0x1]
        %v278 = vld [vmem:[%s269] sm:$0x1]
        %v279 = vld [vmem:[%s3] sm:$0xff]
        %281 = vset.pattern.permute.xlu0 0
        %282 = vperm.xlu0 %281, %v279
        %v283 = vpop.permute.xlu0 %282
        %v286 = vlaneseq
        %v287 = vshrl.u32 %v286, 7
        %v288 = vsub.s32 0, %v287
        %v289 = vrot.slane %v278, %v288
        %vm291 = vcmp.le.f32.partialorder %v283, %v289
        %v292 = vsel %vm291, 1, 0
        %v293 = vcvt.s32.f32 %v292
        %v294 = vrot.slane %v293, 4
        %v295 = vadd.f32 %v293, %v294
        %v296 = vrot.slane %v295, 2
        %v297 = vadd.f32 %v295, %v296
        %v298 = vrot.slane %v297, 1
        %v299 = vadd.f32 %v297, %v298
        %vm300 = vcmp.eq.f32.partialorder %v299, 8.0
        %vm301 = vcmp.eq.f32.partialorder %v299, 0.0
        %vm302 = vmor %vm300, %vm301
        %v303 = vsub.f32 %v299, 1.0
        %v304 = vsel %vm302, 4.0, %v303
        %v305 = vcvt.f32.s32.to.zero.pseudo %v304
        %v306 = vlaneseq
        %v307 = vshrl.u32 %v306, 7
        %vm308 = vcmp.eq.s32.totalorder %v307, %v305
        %v309 = vsel %vm308, 1, 0
        %v310 = vcvt.s32.f32 %v309
        %v312 = vlaneseq
        %v313 = vshrl.u32 %v312, 7
        %v314 = vsub.s32 0, %v313
        %v315 = vrot.slane %v277, %v314
        %v317 = vmul.f32 %v310, %v315
        %v318 = vand.u32 2147483647, %v276
        %v319 = vsub.f32 0.0, %v318
        %v320 = vmul.f32 %v319, 1.442695
        %v321 = vpow.pop %v320
        %v322 = vadd.f32 %v321, 1.0
        %v323 = vlog2.pop %v322
        %v324 = vmul.f32 %v323, 0.6931472
        %v325 = vmul.f32 -0.5, %v321
        %v326 = vadd.f32 %v325, 1.0
        %v327 = vmul.f32 %v326, %v321
        %v328 = vand.u32 2147483647, %v321
        %vm329 = vcmp.lt.f32.partialorder %v328, 0.0004427343
        %v330 = vsel %vm329, %v327, %v324
        %v331 = vmax.f32 %v276, 0.0
        %v332 = vadd.f32 %v331, %v330
        %v333 = vmul.f32 %v317, %v276
        %v334 = vsub.f32 %v332, %v333
        %v335 = vmul.f32 %v293, %v334
        %v336 = vrot.slane %v335, 4
        %v337 = vadd.f32 %v335, %v336
        %v338 = vrot.slane %v337, 2
        %v339 = vadd.f32 %v337, %v338
        %v340 = vrot.slane %v339, 1
        %v341 = vadd.f32 %v339, %v340
        %342 = vadd.xlane.f32.xlu0 %v341
        %v343 = vpop.xlane.xlu0 %342
        %v344 = vld [vmem:[%s259] sm:$0xff]
        %v345 = vadd.f32 %v344, %v343
        %346 = vst [vmem:[%s259] sm:$0xff] %v345
        %s347 = sand.u32 %s146, 1
        %s348 = scalar_lea.sflag [#allocation4], %s347
        %s349 = sand.u32 %s146, 1
        %s350 = smul.addr %s349, 8
        %s351 = scalar_lea.vmem [#allocation5], %s350
        // Predicated region
        $region45: #{tpu_custom_call.1} parent=35 // pred_check
          %p352 = pneg %p156
        $region46: #{tpu_custom_call.1} parent=35 // pred_check_branch
          %354 = sbr.rel (%p352) target = $region48
        $region47: #{tpu_custom_call.1} parent=35 // pred_region
          %s356 = ssub.s32 128, 128
          %357 = vsyncadd %s348, %s356
          %s358 = smul.addr %s25, 128
          %s359 = scalar_lea.hbm %s4, %s358
          %s361 = sshll.u32 %s351, 4
          %s362 = int_to_ptr.vmem [resolvable:$true] %s361
          %364 = dma.vmem_to_hbm [thread:$0]  %s362, 128, %s359, %s348
        $region48: #{tpu_custom_call.1} parent=35 // pred_fallthru
          _
      $region36: #{tpu_custom_call.1} parent=5 // pred_fallthru
        _
      %p365 = scmp.le.s32.totalorder 2, %s16
      // Predicated region
      $region49: #{tpu_custom_call.1} parent=5 // pred_check
        %p366 = pneg %p365
      $region50: #{tpu_custom_call.1} parent=5 // pred_check_branch
        %368 = sbr.rel (%p366) target = $region52
      $region51: #{tpu_custom_call.1} parent=5 // pred_region
        %s369 = ssub.s32 %s16, 2
        // Predicated region
        $region53: #{tpu_custom_call.1} parent=51 // pred_check
          %p370 = pneg %p162
        $region54: #{tpu_custom_call.1} parent=51 // pred_check_branch
          %372 = sbr.rel (%p370) target = $region56
        $region55: #{tpu_custom_call.1} parent=51 // pred_region
          %s373 = sand.u32 %s147, 1
          %s374 = scalar_lea.sflag [#allocation4], %s373
          %s375 = sand.u32 %s147, 1
          %s376 = smul.addr %s375, 8
          %s377 = scalar_lea.vmem [#allocation5], %s376
          %378 = dma.done %s374, 128
        $region56: #{tpu_custom_call.1} parent=51 // pred_fallthru
          _
      $region52: #{tpu_custom_call.1} parent=5 // pred_fallthru
        _
    $region6: #{tpu_custom_call.1} parent=1 // loop_footer
      %s20 = sadd.s32 1, %s16
    $region7: #{tpu_custom_call.1} parent=1 // loop_footer_branch
      %15 = sbr.rel target = $region3
    $region8: #{tpu_custom_call.1} parent=1 // loop_exit
      _
    %379 = vsyncpa [#allocation3], 1
    %s380 = scalar_lea.sflag [#allocation3], 1
    %381 = vsyncpa %s380, 1
    %382 = vsyncpa [#allocation4], 1
    %s383 = scalar_lea.sflag [#allocation4], 1
    %384 = vsyncpa %s383, 1

</llo_original>
